<compile_context>
chip_gen: v7x
topology: tpu7x:2x2x1
jax: 0.10.0
libtpu: 0.0.40
codegen_flags: <defaults>
</compile_context>

<pallas_src>
import jax
import jax.numpy as jnp
from jax.experimental import pallas as pl
from jax.experimental.pallas import tpu as pltpu


# --------------------------------------------------------------------------- #
# Kernel: transposed MLP hot path, everything already in VMEM.
# --------------------------------------------------------------------------- #
def odefunc_t_kernel(xT_ref, w1T_ref, b1_ref, w2T_ref, b2_ref, oT_ref):
    # h^T = ReLU(W1^T @ x^T + b1):  (midp, H) @ (H, Bb) -> (midp, Bb)   [MXU+VPU]
    h = jnp.dot(w1T_ref[...], xT_ref[...], preferred_element_type=jnp.float32)
    h = jnp.maximum(h + b1_ref[...], 0.0)          # b1 is (midp, 1), lane-broadcast
    # y^T = W2^T @ h^T + b2:        (H, midp) @ (midp, Bb) -> (H, Bb)   [MXU+VPU]
    y = jnp.dot(w2T_ref[...], h, preferred_element_type=jnp.float32)
    oT_ref[...] = (y + b2_ref[...]).astype(oT_ref.dtype)


def _cost_estimate(B, H, mid):
    # Logical (un-padded) FLOPs: two GEMMs of H*mid each, per batch element.
    flops = 2 * B * (H * mid + mid * H)
    bytes_accessed = 4 * (2 * B * H + 2 * H * mid + mid + H)
    return pl.CostEstimate(flops=flops, transcendentals=0,
                           bytes_accessed=bytes_accessed)


# --------------------------------------------------------------------------- #
# Parameter preparation — call ONCE, outside the ODE-integrator loop.
# --------------------------------------------------------------------------- #
def prepare_odefunc_params(w1, b1, w2, b2):
    """Pad mid=50 up to 128 and pre-transpose for the (H, B) state layout.

    w1: (H, mid), b1: (mid,), w2: (mid, H), b2: (H,)  ->  dict of padded params.
    Zero-padded hidden units are inert through ReLU and the second matmul.
    """
    H, mid = w1.shape
    midp = max(128, -(-mid // 128) * 128)
    pad = midp - mid
    return dict(
        w1T=jnp.pad(w1, ((0, 0), (0, pad))).T,          # (midp, H)
        b1c=jnp.pad(b1, (0, pad)).reshape(midp, 1),     # (midp, 1)
        w2T=jnp.pad(w2, ((0, pad), (0, 0))).T,          # (H, midp)
        b2c=b2.reshape(H, 1),                           # (H, 1)
        mid=mid,
    )


# --------------------------------------------------------------------------- #
# Execution paths.
# --------------------------------------------------------------------------- #
def _odefunc_t_single(xT, w1T, b1c, w2T, b2c, mid):
    """Small-batch path: no grid, no pipeline — whole problem resident in VMEM."""
    H, B = xT.shape
    vmem = pl.BlockSpec(memory_space=pltpu.MemorySpace.VMEM)
    return pl.pallas_call(
        odefunc_t_kernel,
        out_shape=jax.ShapeDtypeStruct((H, B), xT.dtype),
        in_specs=[vmem, vmem, vmem, vmem, vmem],
        out_specs=vmem,
        cost_estimate=_cost_estimate(B, H, mid),
    )(xT, w1T, b1c, w2T, b2c)


def _odefunc_t_tiled(xT, w1T, b1c, w2T, b2c, mid, block_b):
    """Large-batch path: stream (H, block_b) state tiles, weights stay resident."""
    H, B = xT.shape
    midp = w1T.shape[0]
    return pl.pallas_call(
        odefunc_t_kernel,
        out_shape=jax.ShapeDtypeStruct((H, B), xT.dtype),
        grid=(pl.cdiv(B, block_b),),                     # ragged tail -> masked writeback
        in_specs=[
            pl.BlockSpec((H, block_b), lambda i: (0, i)),   # x^T tile streams (lane-dense)
            pl.BlockSpec((midp, H), lambda i: (0, 0)),      # W1^T resident
            pl.BlockSpec((midp, 1), lambda i: (0, 0)),      # b1 resident
            pl.BlockSpec((H, midp), lambda i: (0, 0)),      # W2^T resident
            pl.BlockSpec((H, 1), lambda i: (0, 0)),         # b2 resident
        ],
        out_specs=pl.BlockSpec((H, block_b), lambda i: (0, i)),
        compiler_params=pltpu.CompilerParams(
            dimension_semantics=("parallel",),               # shard batch tiles across TCs (v7x)
        ),
        cost_estimate=_cost_estimate(B, H, mid),
    )(xT, w1T, b1c, w2T, b2c)


def _pick_block_b(B):
    """Batch-tile width (lane dim). Aim for >=4 grid steps (>=2 per TC on v7x),
    multiple of 512, capped at 4096 so the (128, block) f32 intermediate plus
    double-buffered x/out tiles stay a few MiB on every generation."""
    floor, cap = 512, 4096
    by_steps = ((B // 4) // floor) * floor
    return max(floor, min(cap, by_steps))


# --------------------------------------------------------------------------- #
# Public forward.
# --------------------------------------------------------------------------- #
def odefunc_forward_t(t, xT, params, *, single_shot_max=1024):
    """ODEFunc.forward on transposed state xT of shape (hidden_dim, batch).

    `t` is ignored (matches the PyTorch reference). Carry this (H, B) layout
    through the ODE integrator so no boundary transposes are inserted.
    """
    del t
    H, B = xT.shape
    args = (xT, params["w1T"], params["b1c"], params["w2T"], params["b2c"],
            params["mid"])
    if B <= single_shot_max:
        return _odefunc_t_single(*args)
    return _odefunc_t_tiled(*args, _pick_block_b(B))


def odefunc_forward(t, x, params, **kwargs):
    """Convenience wrapper for the PyTorch (batch, hidden_dim) layout."""
    # TODO(synk): integrators should use odefunc_forward_t to avoid these transposes.
    return odefunc_forward_t(t, x.T, params, **kwargs).T


def reference_forward(x, w1, b1, w2, b2):
    """Pure-JAX reference for correctness checking (standard (B, H) layout)."""
    h = jnp.maximum(x @ w1 + b1, 0.0)
    return h @ w2 + b2


# --------------------------------------------------------------------------- #
# Self-test.
# --------------------------------------------------------------------------- #
if __name__ == "__main__":
    key = jax.random.PRNGKey(0)
    k_x, k_w1, k_b1, k_w2, k_b2, k_t, k_big = jax.random.split(key, 7)

    batch = 8
    hidden_dim = 32
    mid = 50  # matches nn.Linear(hidden_dim, 50)

    x = jax.random.normal(k_x, (batch, hidden_dim), dtype=jnp.float32)
    t = jax.random.normal(k_t, (), dtype=jnp.float32)  # unused by forward

    lim1 = 1.0 / (hidden_dim ** 0.5)
    w1 = jax.random.uniform(k_w1, (hidden_dim, mid), jnp.float32, -lim1, lim1)
    b1 = jax.random.uniform(k_b1, (mid,), jnp.float32, -lim1, lim1)

    lim2 = 1.0 / (mid ** 0.5)
    w2 = jax.random.uniform(k_w2, (mid, hidden_dim), jnp.float32, -lim2, lim2)
    b2 = jax.random.uniform(k_b2, (hidden_dim,), jnp.float32, -lim2, lim2)

    # Pad / transpose weights ONCE (outside any integrator loop).
    params = prepare_odefunc_params(w1, b1, w2, b2)

    # Small-batch (grid-free, fully VMEM-resident) path via (B, H) wrapper.
    out = jax.block_until_ready(odefunc_forward(t, x, params))
    ref = reference_forward(x, w1, b1, w2, b2)
    assert out.shape == (batch, hidden_dim)
    assert jnp.allclose(out, ref, atol=1e-5, rtol=1e-5), "small-batch mismatch"

    # Large ragged batch via the transposed-state API (no pad / no slice passes,
    # partial last tile handled by masked writeback).
    big_b = 2500
    xT_big = jax.random.normal(k_big, (hidden_dim, big_b), dtype=jnp.float32)
    outT_big = jax.block_until_ready(odefunc_forward_t(t, xT_big, params))
    ref_big = reference_forward(xT_big.T, w1, b1, w2, b2)
    assert outT_big.shape == (hidden_dim, big_b)
    assert jnp.allclose(outT_big.T, ref_big, atol=1e-5, rtol=1e-5), "tiled mismatch"

    print("KERNEL_OK")
</pallas_src>

<mosaic_0001>
module attributes {stable_mosaic.version = 11 : i64} {
  func.func @odefunc_t_kernel(%arg0: memref<32x8xf32, #tpu.memory_space<vmem>>, %arg1: memref<128x32xf32, #tpu.memory_space<vmem>>, %arg2: memref<128x1xf32, #tpu.memory_space<vmem>>, %arg3: memref<32x128xf32, #tpu.memory_space<vmem>>, %arg4: memref<32x1xf32, #tpu.memory_space<vmem>>, %arg5: memref<32x8xf32, #tpu.memory_space<vmem>>) attributes {dimension_semantics = [], scalar_prefetch = 0 : i64, scratch_operands = 0 : i64, tpu.core_type = #tpu.core_type<tc>} {
    %c0 = arith.constant 0 : index
    %c0_0 = arith.constant 0 : index
    %0 = vector.load %arg1[%c0, %c0_0] : memref<128x32xf32, #tpu.memory_space<vmem>>, vector<128x32xf32>
    %c0_1 = arith.constant 0 : index
    %c0_2 = arith.constant 0 : index
    %1 = vector.load %arg0[%c0_1, %c0_2] : memref<32x8xf32, #tpu.memory_space<vmem>>, vector<32x8xf32>
    %cst = arith.constant dense<0.000000e+00> : vector<128x8xf32>
    %2 = tpu.matmul %0, %1, %cst {dimension_numbers = #tpu.dot_dimension_numbers<[1], [0], [0], [1], [0, 0, 1, 1], [], []>} : vector<128x32xf32>, vector<32x8xf32>, vector<128x8xf32> -> vector<128x8xf32>
    %c0_3 = arith.constant 0 : index
    %c0_4 = arith.constant 0 : index
    %3 = vector.load %arg2[%c0_3, %c0_4] : memref<128x1xf32, #tpu.memory_space<vmem>>, vector<128x1xf32>
    %4 = vector.broadcast %3 : vector<128x1xf32> to vector<128x8xf32>
    %5 = arith.addf %2, %4 : vector<128x8xf32>
    %cst_5 = arith.constant 0.000000e+00 : f32
    %6 = vector.broadcast %cst_5 : f32 to vector<128x8xf32>
    %7 = arith.maximumf %5, %6 : vector<128x8xf32>
    %c0_6 = arith.constant 0 : index
    %c0_7 = arith.constant 0 : index
    %8 = vector.load %arg3[%c0_6, %c0_7] : memref<32x128xf32, #tpu.memory_space<vmem>>, vector<32x128xf32>
    %cst_8 = arith.constant dense<0.000000e+00> : vector<32x8xf32>
    %9 = tpu.matmul %8, %7, %cst_8 {dimension_numbers = #tpu.dot_dimension_numbers<[1], [0], [0], [1], [0, 0, 1, 1], [], []>} : vector<32x128xf32>, vector<128x8xf32>, vector<32x8xf32> -> vector<32x8xf32>
    %c0_9 = arith.constant 0 : index
    %c0_10 = arith.constant 0 : index
    %10 = vector.load %arg4[%c0_9, %c0_10] : memref<32x1xf32, #tpu.memory_space<vmem>>, vector<32x1xf32>
    %11 = vector.broadcast %10 : vector<32x1xf32> to vector<32x8xf32>
    %12 = arith.addf %9, %11 : vector<32x8xf32>
    %c0_11 = arith.constant 0 : index
    %c0_12 = arith.constant 0 : index
    %13 = vector.load %arg5[%c0_11, %c0_12] : memref<32x8xf32, #tpu.memory_space<vmem>>, vector<32x8xf32>
    tpu.vector_store %arg5[%c0_11, %c0_12], %12 {strides = array<i32>} : memref<32x8xf32, #tpu.memory_space<vmem>>, vector<32x8xf32>,
    return
  }
}

</mosaic_0001>

<llo_original>
// kernel: tpu_custom_call.1
$region0: #{tpu_custom_call.1}
  #allocation0 [shape = 'u32[]', space=smem, size = 0x4, offset = 0x4, fixed_abs, tag = 'smem constant byte address 0x4 - core index']
  #allocation1 [shape = 'u32[144,128]{1,0:T(1,128)}', space=vmem, size = 0x12000, scoped, tag = 'internal scratch']
  %s0 = inlined_call_operand.vmem [shape: f32[32,8], index: 0, kind: input, shape index: {}]
  %s1 = inlined_call_operand.vmem [shape: f32[128,32], index: 1, kind: input, shape index: {}]
  %s2 = inlined_call_operand.vmem [shape: f32[128,1], index: 2, kind: input, shape index: {}]
  %s3 = inlined_call_operand.vmem [shape: f32[32,128], index: 3, kind: input, shape index: {}]
  %s4 = inlined_call_operand.vmem [shape: f32[32,1], index: 4, kind: input, shape index: {}]
  %s5 = inlined_call_operand.vmem [shape: f32[32,8], index: 5, kind: output, shape index: {}]
  %s6 = sld [smem:[#allocation0]]
  $region30: #{tpu_custom_call.1} parent=0
    _
  %s8 = ssub.s32 1, %s6
  %s9 = scalar_select 0, %s8, %s6
  // Predicated region
  $region2: #{tpu_custom_call.1} parent=0 // pred_check
    _
  $region3: #{tpu_custom_call.1} parent=0 // pred_check_branch
    %11 = sbr.rel (0) target = $region5
  $region4: #{tpu_custom_call.1} parent=0 // pred_region
    _
  $region5: #{tpu_custom_call.1} parent=0 // pred_fallthru
    _
  // Predicated region
  $region6: #{tpu_custom_call.1} parent=0 // pred_check
    _
  $region7: #{tpu_custom_call.1} parent=0 // pred_check_branch
    %13 = sbr.rel (0) target = $region9
  $region8: #{tpu_custom_call.1} parent=0 // pred_region
    _
  $region9: #{tpu_custom_call.1} parent=0 // pred_fallthru
    _
  // Predicated region
  $region10: #{tpu_custom_call.1} parent=0 // pred_check
    _
  $region11: #{tpu_custom_call.1} parent=0 // pred_check_branch
    %15 = sbr.rel (0) target = $region13
  $region12: #{tpu_custom_call.1} parent=0 // pred_region
    _
  $region13: #{tpu_custom_call.1} parent=0 // pred_fallthru
    _
  // Predicated region
  $region14: #{tpu_custom_call.1} parent=0 // pred_check
    _
  $region15: #{tpu_custom_call.1} parent=0 // pred_check_branch
    %17 = sbr.rel (0) target = $region17
  $region16: #{tpu_custom_call.1} parent=0 // pred_region
    _
  $region17: #{tpu_custom_call.1} parent=0 // pred_fallthru
    _
  // Predicated region
  $region18: #{tpu_custom_call.1} parent=0 // pred_check
    _
  $region19: #{tpu_custom_call.1} parent=0 // pred_check_branch
    %19 = sbr.rel (0) target = $region21
  $region20: #{tpu_custom_call.1} parent=0 // pred_region
    _
  $region21: #{tpu_custom_call.1} parent=0 // pred_fallthru
    _
  %v20 = vld [vmem:[%s1] sm:$0xff]
  %v21 = vld [vmem:[%s1 + $0x8] sm:$0xff]
  %v22 = vld [vmem:[%s1 + $0x10] sm:$0xff]
  %v23 = vld [vmem:[%s1 + $0x18] sm:$0xff]
  %v24 = vld [vmem:[%s1 + $0x20] sm:$0xff]
  %v25 = vld [vmem:[%s1 + $0x28] sm:$0xff]
  %v26 = vld [vmem:[%s1 + $0x30] sm:$0xff]
  %v27 = vld [vmem:[%s1 + $0x38] sm:$0xff]
  %v28 = vld [vmem:[%s1 + $0x40] sm:$0xff]
  %v29 = vld [vmem:[%s1 + $0x48] sm:$0xff]
  %v30 = vld [vmem:[%s1 + $0x50] sm:$0xff]
  %v31 = vld [vmem:[%s1 + $0x58] sm:$0xff]
  %v32 = vld [vmem:[%s1 + $0x60] sm:$0xff]
  %v33 = vld [vmem:[%s1 + $0x68] sm:$0xff]
  %v34 = vld [vmem:[%s1 + $0x70] sm:$0xff]
  %v35 = vld [vmem:[%s1 + $0x78] sm:$0xff]
  %v36 = vld [vmem:[%s0] sm:$0xff]
  %v37 = vld [vmem:[%s0 + $0x8] sm:$0xff]
  %v38 = vld [vmem:[%s0 + $0x10] sm:$0xff]
  %v39 = vld [vmem:[%s0 + $0x18] sm:$0xff]
  %v40 = vld [vmem:[%s2] sm:$0xff]
  %v41 = vld [vmem:[%s2 + $0x8] sm:$0xff]
  %v42 = vld [vmem:[%s2 + $0x10] sm:$0xff]
  %v43 = vld [vmem:[%s2 + $0x18] sm:$0xff]
  %v44 = vld [vmem:[%s2 + $0x20] sm:$0xff]
  %v45 = vld [vmem:[%s2 + $0x28] sm:$0xff]
  %v46 = vld [vmem:[%s2 + $0x30] sm:$0xff]
  %v47 = vld [vmem:[%s2 + $0x38] sm:$0xff]
  %v48 = vld [vmem:[%s2 + $0x40] sm:$0xff]
  %v49 = vld [vmem:[%s2 + $0x48] sm:$0xff]
  %v50 = vld [vmem:[%s2 + $0x50] sm:$0xff]
  %v51 = vld [vmem:[%s2 + $0x58] sm:$0xff]
  %v52 = vld [vmem:[%s2 + $0x60] sm:$0xff]
  %v53 = vld [vmem:[%s2 + $0x68] sm:$0xff]
  %v54 = vld [vmem:[%s2 + $0x70] sm:$0xff]
  %v55 = vld [vmem:[%s2 + $0x78] sm:$0xff]
  %57 = vset.pattern.permute.xlu0 0
  %58 = vperm.xlu0 %57, %v40
  %v59 = vpop.permute.xlu0 %58
  %62 = vset.pattern.permute.xlu0 0
  %63 = vperm.xlu0 %62, %v41
  %v64 = vpop.permute.xlu0 %63
  %67 = vset.pattern.permute.xlu0 0
  %68 = vperm.xlu0 %67, %v42
  %v69 = vpop.permute.xlu0 %68
  %72 = vset.pattern.permute.xlu0 0
  %73 = vperm.xlu0 %72, %v43
  %v74 = vpop.permute.xlu0 %73
  %77 = vset.pattern.permute.xlu0 0
  %78 = vperm.xlu0 %77, %v44
  %v79 = vpop.permute.xlu0 %78
  %82 = vset.pattern.permute.xlu0 0
  %83 = vperm.xlu0 %82, %v45
  %v84 = vpop.permute.xlu0 %83
  %87 = vset.pattern.permute.xlu0 0
  %88 = vperm.xlu0 %87, %v46
  %v89 = vpop.permute.xlu0 %88
  %92 = vset.pattern.permute.xlu0 0
  %93 = vperm.xlu0 %92, %v47
  %v94 = vpop.permute.xlu0 %93
  %97 = vset.pattern.permute.xlu0 0
  %98 = vperm.xlu0 %97, %v48
  %v99 = vpop.permute.xlu0 %98
  %102 = vset.pattern.permute.xlu0 0
  %103 = vperm.xlu0 %102, %v49
  %v104 = vpop.permute.xlu0 %103
  %107 = vset.pattern.permute.xlu0 0
  %108 = vperm.xlu0 %107, %v50
  %v109 = vpop.permute.xlu0 %108
  %112 = vset.pattern.permute.xlu0 0
  %113 = vperm.xlu0 %112, %v51
  %v114 = vpop.permute.xlu0 %113
  %117 = vset.pattern.permute.xlu0 0
  %118 = vperm.xlu0 %117, %v52
  %v119 = vpop.permute.xlu0 %118
  %122 = vset.pattern.permute.xlu0 0
  %123 = vperm.xlu0 %122, %v53
  %v124 = vpop.permute.xlu0 %123
  %127 = vset.pattern.permute.xlu0 0
  %128 = vperm.xlu0 %127, %v54
  %v129 = vpop.permute.xlu0 %128
  %132 = vset.pattern.permute.xlu0 0
  %133 = vperm.xlu0 %132, %v55
  %v134 = vpop.permute.xlu0 %133
  %vm136 = vcmask 261120
  %v138 = vsel %vm136, %v20, 0
  %v141 = vsel %vm136, %v21, 0
  %v144 = vsel %vm136, %v22, 0
  %v147 = vsel %vm136, %v23, 0
  %v150 = vsel %vm136, %v24, 0
  %v153 = vsel %vm136, %v25, 0
  %v156 = vsel %vm136, %v26, 0
  %v159 = vsel %vm136, %v27, 0
  %v162 = vsel %vm136, %v28, 0
  %v165 = vsel %vm136, %v29, 0
  %v168 = vsel %vm136, %v30, 0
  %v171 = vsel %vm136, %v31, 0
  %v174 = vsel %vm136, %v32, 0
  %v177 = vsel %vm136, %v33, 0
  %v180 = vsel %vm136, %v34, 0
  %v183 = vsel %vm136, %v35, 0
  %185 = vmatprep.subr.mxu0 0.0
  %186 = vmatpush1.msra.mxu0 %v36
  %187 = vmatprep.subr.mxu0 0.0
  %188 = vmatpush1.msra.mxu0 %v37
  %189 = vmatprep.subr.mxu0 0.0
  %190 = vmatpush1.msra.mxu0 %v38
  %191 = vmatprep.subr.mxu0 0.0
  %192 = vmatpush1.msra.mxu0 %v39
  %193 = vmatprep.subr.mxu0 0.0
  %194 = vmatpush1.msra.mxu0 0.0
  %195 = vmatprep.subr.mxu0 0.0
  %196 = vmatpush1.msra.mxu0 0.0
  %197 = vmatprep.subr.mxu0 0.0
  %198 = vmatpush1.msra.mxu0 0.0
  %199 = vmatprep.subr.mxu0 0.0
  %200 = vmatpush1.msra.mxu0 0.0
  %201 = vmatprep.subr.mxu0 0.0
  %202 = vmatpush1.msra.mxu0 0.0
  %203 = vmatprep.subr.mxu0 0.0
  %204 = vmatpush1.msra.mxu0 0.0
  %205 = vmatprep.subr.mxu0 0.0
  %206 = vmatpush1.msra.mxu0 0.0
  %207 = vmatprep.subr.mxu0 0.0
  %208 = vmatpush1.msra.mxu0 0.0
  %209 = vmatprep.subr.mxu0 0.0
  %210 = vmatpush1.msra.mxu0 0.0
  %211 = vmatprep.subr.mxu0 0.0
  %212 = vmatpush1.msra.mxu0 0.0
  %213 = vmatprep.subr.mxu0 0.0
  %214 = vmatpush1.msra.mxu0 0.0
  %215 = vmatprep.subr.mxu0 0.0
  %216 = vmatpush1.msra.mxu0 0.0
  %217 = vmatprep.subr.mxu0 0.0
  %218 = vmatpush1.msra.mxu0 0.0
  %219 = vmatprep.subr.mxu0 0.0
  %220 = vmatpush1.msra.mxu0 0.0
  %221 = vmatprep.subr.mxu0 0.0
  %222 = vmatpush1.msra.mxu0 0.0
  %223 = vmatprep.subr.mxu0 0.0
  %224 = vmatpush1.msra.mxu0 0.0
  %225 = vmatprep.subr.mxu0 0.0
  %226 = vmatpush1.msra.mxu0 0.0
  %227 = vmatprep.subr.mxu0 0.0
  %228 = vmatpush1.msra.mxu0 0.0
  %229 = vmatprep.subr.mxu0 0.0
  %230 = vmatpush1.msra.mxu0 0.0
  %231 = vmatprep.subr.mxu0 0.0
  %232 = vmatpush1.msra.mxu0 0.0
  %233 = vmatprep.subr.mxu0 0.0
  %234 = vmatpush1.msra.mxu0 0.0
  %235 = vmatprep.subr.mxu0 0.0
  %236 = vmatpush1.msra.mxu0 0.0
  %237 = vmatprep.subr.mxu0 0.0
  %238 = vmatpush1.msra.mxu0 0.0
  %239 = vmatprep.subr.mxu0 0.0
  %240 = vmatpush1.msra.mxu0 0.0
  %241 = vmatprep.subr.mxu0 0.0
  %242 = vmatpush1.msra.mxu0 0.0
  %243 = vmatprep.subr.mxu0 0.0
  %244 = vmatpush1.msra.mxu0 0.0
  %245 = vmatprep.subr.mxu0 0.0
  %246 = vmatpush1.msra.mxu0 0.0
  %247 = vmatprep.subr.mxu0 0.0
  %248 = vmatpush1.msra.mxu0 0.0
  %249 = vmatprep.mubr.f32.mxu0 0.0
  %250 = vmatmul.mubr.f32.gmra.mrb[0].mxu0 %v138
  %v251 = vpop.f32.mrb[0].mxu0
  %v252 = vadd.f32 %v59, %v251
  %v253 = vpop.f32.mrb[0].mxu0
  %254 = vmatprep.mubr.f32.mxu0 0.0
  %255 = vmatmul.mubr.f32.gmra.mrb[0].mxu0 %v141
  %v256 = vpop.f32.mrb[0].mxu0
  %v257 = vadd.f32 %v64, %v256
  %v258 = vpop.f32.mrb[0].mxu0
  %259 = vmatprep.mubr.f32.mxu0 0.0
  %260 = vmatmul.mubr.f32.gmra.mrb[0].mxu0 %v144
  %v261 = vpop.f32.mrb[0].mxu0
  %v262 = vadd.f32 %v69, %v261
  %v263 = vpop.f32.mrb[0].mxu0
  %264 = vmatprep.mubr.f32.mxu0 0.0
  %265 = vmatmul.mubr.f32.gmra.mrb[0].mxu0 %v147
  %v266 = vpop.f32.mrb[0].mxu0
  %v267 = vadd.f32 %v74, %v266
  %v268 = vpop.f32.mrb[0].mxu0
  %269 = vmatprep.mubr.f32.mxu0 0.0
  %270 = vmatmul.mubr.f32.gmra.mrb[0].mxu0 %v150
  %v271 = vpop.f32.mrb[0].mxu0
  %v272 = vadd.f32 %v79, %v271
  %v273 = vpop.f32.mrb[0].mxu0
  %274 = vmatprep.mubr.f32.mxu0 0.0
  %275 = vmatmul.mubr.f32.gmra.mrb[0].mxu0 %v153
  %v276 = vpop.f32.mrb[0].mxu0
  %v277 = vadd.f32 %v84, %v276
  %v278 = vpop.f32.mrb[0].mxu0
  %279 = vmatprep.mubr.f32.mxu0 0.0
  %280 = vmatmul.mubr.f32.gmra.mrb[0].mxu0 %v156
  %v281 = vpop.f32.mrb[0].mxu0
  %v282 = vadd.f32 %v89, %v281
  %v283 = vpop.f32.mrb[0].mxu0
  %284 = vmatprep.mubr.f32.mxu0 0.0
  %285 = vmatmul.mubr.f32.gmra.mrb[0].mxu0 %v159
  %v286 = vpop.f32.mrb[0].mxu0
  %v287 = vadd.f32 %v94, %v286
  %v288 = vpop.f32.mrb[0].mxu0
  %289 = vmatprep.mubr.f32.mxu0 0.0
  %290 = vmatmul.mubr.f32.gmra.mrb[0].mxu0 %v162
  %v291 = vpop.f32.mrb[0].mxu0
  %v292 = vadd.f32 %v99, %v291
  %v293 = vpop.f32.mrb[0].mxu0
  %294 = vmatprep.mubr.f32.mxu0 0.0
  %295 = vmatmul.mubr.f32.gmra.mrb[0].mxu0 %v165
  %v296 = vpop.f32.mrb[0].mxu0
  %v297 = vadd.f32 %v104, %v296
  %v298 = vpop.f32.mrb[0].mxu0
  %299 = vmatprep.mubr.f32.mxu0 0.0
  %300 = vmatmul.mubr.f32.gmra.mrb[0].mxu0 %v168
  %v301 = vpop.f32.mrb[0].mxu0
  %v302 = vadd.f32 %v109, %v301
  %v303 = vpop.f32.mrb[0].mxu0
  %304 = vmatprep.mubr.f32.mxu0 0.0
  %305 = vmatmul.mubr.f32.gmra.mrb[0].mxu0 %v171
  %v306 = vpop.f32.mrb[0].mxu0
  %v307 = vadd.f32 %v114, %v306
  %v308 = vpop.f32.mrb[0].mxu0
  %309 = vmatprep.mubr.f32.mxu0 0.0
  %310 = vmatmul.mubr.f32.gmra.mrb[0].mxu0 %v174
  %v311 = vpop.f32.mrb[0].mxu0
  %v312 = vadd.f32 %v119, %v311
  %v313 = vpop.f32.mrb[0].mxu0
  %314 = vmatprep.mubr.f32.mxu0 0.0
  %315 = vmatmul.mubr.f32.gmra.mrb[0].mxu0 %v177
  %v316 = vpop.f32.mrb[0].mxu0
  %v317 = vadd.f32 %v124, %v316
  %v318 = vpop.f32.mrb[0].mxu0
  %319 = vmatprep.mubr.f32.mxu0 0.0
  %320 = vmatmul.mubr.f32.gmra.mrb[0].mxu0 %v180
  %v321 = vpop.f32.mrb[0].mxu0
  %v322 = vadd.f32 %v129, %v321
  %v323 = vpop.f32.mrb[0].mxu0
  %324 = vmatprep.mubr.f32.mxu0 0.0
  %325 = vmatmul.mubr.f32.gmra.mrb[0].mxu0 %v183
  %v326 = vpop.f32.mrb[0].mxu0
  %v327 = vadd.f32 %v134, %v326
  %v328 = vpop.f32.mrb[0].mxu0
  %329 = vdwg.mxu0
  %v330 = vmax.f32 %v252, 0.0
  %v331 = vmax.f32 %v257, 0.0
  %v332 = vmax.f32 %v262, 0.0
  %v333 = vmax.f32 %v267, 0.0
  %v334 = vmax.f32 %v272, 0.0
  %v335 = vmax.f32 %v277, 0.0
  %v336 = vmax.f32 %v282, 0.0
  %v337 = vmax.f32 %v287, 0.0
  %v338 = vmax.f32 %v292, 0.0
  %v339 = vmax.f32 %v297, 0.0
  %v340 = vmax.f32 %v302, 0.0
  %v341 = vmax.f32 %v307, 0.0
  %v342 = vmax.f32 %v312, 0.0
  %v343 = vmax.f32 %v317, 0.0
  %v344 = vmax.f32 %v322, 0.0
  %v345 = vmax.f32 %v327, 0.0
  %v346 = vld [vmem:[%s3] sm:$0xff]
  %v347 = vld [vmem:[%s3 + $0x8] sm:$0xff]
  %v348 = vld [vmem:[%s3 + $0x10] sm:$0xff]
  %v349 = vld [vmem:[%s3 + $0x18] sm:$0xff]
  %v350 = vld [vmem:[%s4] sm:$0xff]
  %v351 = vld [vmem:[%s4 + $0x8] sm:$0xff]
  %v352 = vld [vmem:[%s4 + $0x10] sm:$0xff]
  %v353 = vld [vmem:[%s4 + $0x18] sm:$0xff]
  %355 = vset.pattern.permute.xlu0 0
  %356 = vperm.xlu0 %355, %v350
  %v357 = vpop.permute.xlu0 %356
  %360 = vset.pattern.permute.xlu0 0
  %361 = vperm.xlu0 %360, %v351
  %v362 = vpop.permute.xlu0 %361
  %365 = vset.pattern.permute.xlu0 0
  %366 = vperm.xlu0 %365, %v352
  %v367 = vpop.permute.xlu0 %366
  %370 = vset.pattern.permute.xlu0 0
  %371 = vperm.xlu0 %370, %v353
  %v372 = vpop.permute.xlu0 %371
  %374 = vmatprep.subr.mxu0 0.0
  %375 = vmatpush1.msra.mxu0 %v330
  %376 = vmatprep.subr.mxu0 0.0
  %377 = vmatpush1.msra.mxu0 %v331
  %378 = vmatprep.subr.mxu0 0.0
  %379 = vmatpush1.msra.mxu0 %v332
  %380 = vmatprep.subr.mxu0 0.0
  %381 = vmatpush1.msra.mxu0 %v333
  %382 = vmatprep.subr.mxu0 0.0
  %383 = vmatpush1.msra.mxu0 %v334
  %384 = vmatprep.subr.mxu0 0.0
  %385 = vmatpush1.msra.mxu0 %v335
  %386 = vmatprep.subr.mxu0 0.0
  %387 = vmatpush1.msra.mxu0 %v336
  %388 = vmatprep.subr.mxu0 0.0
  %389 = vmatpush1.msra.mxu0 %v337
  %390 = vmatprep.subr.mxu0 0.0
  %391 = vmatpush1.msra.mxu0 %v338
  %392 = vmatprep.subr.mxu0 0.0
  %393 = vmatpush1.msra.mxu0 %v339
  %394 = vmatprep.subr.mxu0 0.0
  %395 = vmatpush1.msra.mxu0 %v340
  %396 = vmatprep.subr.mxu0 0.0
  %397 = vmatpush1.msra.mxu0 %v341
  %398 = vmatprep.subr.mxu0 0.0
  %399 = vmatpush1.msra.mxu0 %v342
  %400 = vmatprep.subr.mxu0 0.0
  %401 = vmatpush1.msra.mxu0 %v343
  %402 = vmatprep.subr.mxu0 0.0
  %403 = vmatpush1.msra.mxu0 %v344
  %404 = vmatprep.subr.mxu0 0.0
  %405 = vmatpush1.msra.mxu0 %v345
  %406 = vmatprep.subr.mxu0 0.0
  %407 = vmatpush1.msra.mxu0 0.0
  %408 = vmatprep.subr.mxu0 0.0
  %409 = vmatpush1.msra.mxu0 0.0
  %410 = vmatprep.subr.mxu0 0.0
  %411 = vmatpush1.msra.mxu0 0.0
  %412 = vmatprep.subr.mxu0 0.0
  %413 = vmatpush1.msra.mxu0 0.0
  %414 = vmatprep.subr.mxu0 0.0
  %415 = vmatpush1.msra.mxu0 0.0
  %416 = vmatprep.subr.mxu0 0.0
  %417 = vmatpush1.msra.mxu0 0.0
  %418 = vmatprep.subr.mxu0 0.0
  %419 = vmatpush1.msra.mxu0 0.0
  %420 = vmatprep.subr.mxu0 0.0
  %421 = vmatpush1.msra.mxu0 0.0
  %422 = vmatprep.subr.mxu0 0.0
  %423 = vmatpush1.msra.mxu0 0.0
  %424 = vmatprep.subr.mxu0 0.0
  %425 = vmatpush1.msra.mxu0 0.0
  %426 = vmatprep.subr.mxu0 0.0
  %427 = vmatpush1.msra.mxu0 0.0
  %428 = vmatprep.subr.mxu0 0.0
  %429 = vmatpush1.msra.mxu0 0.0
  %430 = vmatprep.subr.mxu0 0.0
  %431 = vmatpush1.msra.mxu0 0.0
  %432 = vmatprep.subr.mxu0 0.0
  %433 = vmatpush1.msra.mxu0 0.0
  %434 = vmatprep.subr.mxu0 0.0
  %435 = vmatpush1.msra.mxu0 0.0
  %436 = vmatprep.subr.mxu0 0.0
  %437 = vmatpush1.msra.mxu0 0.0
  %438 = vmatprep.mubr.f32.mxu0 0.0
  %439 = vmatmul.mubr.f32.gmra.mrb[0].mxu0 %v346
  %v440 = vpop.f32.mrb[0].mxu0
  %v441 = vadd.f32 %v357, %v440
  %v442 = vpop.f32.mrb[0].mxu0
  %443 = vmatprep.mubr.f32.mxu0 0.0
  %444 = vmatmul.mubr.f32.gmra.mrb[0].mxu0 %v347
  %v445 = vpop.f32.mrb[0].mxu0
  %v446 = vadd.f32 %v362, %v445
  %v447 = vpop.f32.mrb[0].mxu0
  %448 = vmatprep.mubr.f32.mxu0 0.0
  %449 = vmatmul.mubr.f32.gmra.mrb[0].mxu0 %v348
  %v450 = vpop.f32.mrb[0].mxu0
  %v451 = vadd.f32 %v367, %v450
  %v452 = vpop.f32.mrb[0].mxu0
  %453 = vmatprep.mubr.f32.mxu0 0.0
  %454 = vmatmul.mubr.f32.gmra.mrb[0].mxu0 %v349
  %v455 = vpop.f32.mrb[0].mxu0
  %v456 = vadd.f32 %v372, %v455
  %v457 = vpop.f32.mrb[0].mxu0
  %458 = vdwg.mxu0
  %vm459 = vcmask 64512
  %460 = vst.msk [vmem:[%s5] sm:$0xff] %vm459, %v441
  %461 = vst.msk [vmem:[%s5 + $0x8] sm:$0xff] %vm459, %v446
  %462 = vst.msk [vmem:[%s5 + $0x10] sm:$0xff] %vm459, %v451
  %463 = vst.msk [vmem:[%s5 + $0x18] sm:$0xff] %vm459, %v456
  // Predicated region
  $region22: #{tpu_custom_call.1} parent=0 // pred_check
    _
  $region23: #{tpu_custom_call.1} parent=0 // pred_check_branch
    %465 = sbr.rel (0) target = $region25
  $region24: #{tpu_custom_call.1} parent=0 // pred_region
    _
  $region25: #{tpu_custom_call.1} parent=0 // pred_fallthru
    _
  // Predicated region
  $region26: #{tpu_custom_call.1} parent=0 // pred_check
    _
  $region27: #{tpu_custom_call.1} parent=0 // pred_check_branch
    %467 = sbr.rel (0) target = $region29
  $region28: #{tpu_custom_call.1} parent=0 // pred_region
    _
  $region29: #{tpu_custom_call.1} parent=0 // pred_fallthru
    _

</llo_original>
